<compile_context>
chip_gen: v7x
topology: tpu7x:2x2x1
jax: 0.10.0
libtpu: 0.0.40
codegen_flags: <defaults>
</compile_context>

<pallas_src>
import jax
import jax.numpy as jnp
from jax.experimental import pallas as pl
from jax.experimental.pallas import tpu as pltpu

EPS = 1e-5
LANE = 128


def _bn_complex_kernel(x_ref, o_ref):
    # x_ref / o_ref: [b, 2, tile_s, 128] in VMEM. Full batch resident per block
    # (required: the mean below is over the whole batch axis of the block).
    b = x_ref.shape[0]
    tile_s, lane = x_ref.shape[2], x_ref.shape[3]

    # Pass 1: accumulate sum_b (r^2 + i^2) in f32 without materializing an
    # f32 copy of the whole block.
    s = jnp.zeros((tile_s, lane), jnp.float32)
    for bi in range(b):
        xr = x_ref[bi, 0].astype(jnp.float32)
        xi = x_ref[bi, 1].astype(jnp.float32)
        s = s + xr * xr + xi * xi

    # Fold mean's 1/b and both epsilons into a single rsqrt:
    #   1/sqrt(mean(r^2+i^2+EPS) + EPS) == rsqrt(sum(r^2+i^2)/b + 2*EPS)
    inv = jax.lax.rsqrt(s * (1.0 / b) + 2.0 * EPS)  # [tile_s, lane], f32

    # Pass 2: normalize row by row (keeps the live set to one slab per store).
    for bi in range(b):
        for ci in range(2):
            o_ref[bi, ci] = (x_ref[bi, ci].astype(jnp.float32) * inv).astype(o_ref.dtype)


def _pick_tile_s(s_total, b, itemsize, max_block_bytes):
    """Fixed sublane-aligned tile (cdiv grid handles the remainder)."""
    # Sub-32-bit dtypes pack along sublanes; align tiles to the packed count.
    if itemsize >= 4:
        pack = 8
    elif itemsize == 2:
        pack = 16
    else:
        pack = 32

    per_row_bytes = b * 2 * LANE * itemsize
    # Rows that fit the single-input-block budget (caller accounts for the
    # ~4x double-buffered in+out footprint in vmem_limit_bytes).
    budget_rows = max(pack, (max_block_bytes // per_row_bytes) // pack * pack)
    # Keep >=4 grid steps on large tensors (megacore sharding + pipelining).
    quarter_rows = ((s_total + 3) // 4 + pack - 1) // pack * pack
    tile = max(pack, min(budget_rows, quarter_rows))
    if tile >= s_total:
        # Whole spatial axis fits in one (small) block; full-dim block is
        # always layout-legal.
        tile = s_total
    return tile


def batch_norm_complex(x, *, max_block_bytes=6 * 1024 * 1024):
    """x: [b, 2, c, h, w] -> [b, 2, c, h, w]  (track_running_stats=False)."""
    b, two, c, h, w = x.shape
    assert two == 2
    n = c * h * w
    itemsize = jnp.dtype(x.dtype).itemsize

    # Lane-dense view, padded to a multiple of 128 lanes if needed.
    n_pad = ((n + LANE - 1) // LANE) * LANE
    s_total = n_pad // LANE

    x_flat = x.reshape(b, 2, n)
    if n_pad != n:
        x_flat = jnp.pad(x_flat, ((0, 0), (0, 0), (0, n_pad - n)))
    x_view = x_flat.reshape(b, 2, s_total, LANE)

    tile_s = _pick_tile_s(s_total, b, itemsize, max_block_bytes)
    grid = (pl.cdiv(s_total, tile_s),)

    # Explicit VMEM accounting: input + output blocks, each double-buffered,
    # plus margin for internal scratch.  Clamp to a budget safe on all
    # generations (v7x physical VMEM is 64 MiB/TC).
    block_bytes = b * 2 * tile_s * LANE * itemsize
    vmem_limit = max(32 * 1024 * 1024,
                     min(48 * 1024 * 1024, 4 * block_bytes + 8 * 1024 * 1024))

    out_view = pl.pallas_call(
        _bn_complex_kernel,
        out_shape=jax.ShapeDtypeStruct((b, 2, s_total, LANE), x.dtype),
        grid_spec=pltpu.PrefetchScalarGridSpec(
            num_scalar_prefetch=0,
            grid=grid,
            # Batch index pinned to 0: full batch resident in every block
            # (the in-kernel mean is only correct under this tiling).
            in_specs=[pl.BlockSpec((b, 2, tile_s, LANE), lambda i: (0, 0, i, 0))],
            out_specs=pl.BlockSpec((b, 2, tile_s, LANE), lambda i: (0, 0, i, 0)),
        ),
        compiler_params=pltpu.CompilerParams(
            dimension_semantics=("parallel",),
            vmem_limit_bytes=vmem_limit,
        ),
    )(x_view)

    out_flat = out_view.reshape(b, 2, n_pad)
    if n_pad != n:
        out_flat = out_flat[:, :, :n]
    return out_flat.reshape(b, 2, c, h, w)


def _reference(x):
    xr = x[:, 0].astype(jnp.float32)
    xi = x[:, 1].astype(jnp.float32)
    norm_sq = xr ** 2 + xi ** 2 + EPS
    mean = jnp.mean(norm_sq, axis=0)
    out = x.astype(jnp.float32) / jnp.sqrt(mean + EPS)[None, None]
    return out.astype(x.dtype)


if __name__ == "__main__":
    key = jax.random.PRNGKey(0)

    # Main case: [b,2,c,h,w] = [2,2,4,16,16]  (c*h*w = 1024, multiple of 128).
    b, c, h, w = 2, 4, 16, 16
    x = jax.random.normal(key, (b, 2, c, h, w), dtype=jnp.float32)
    out = jax.block_until_ready(batch_norm_complex(x))
    ref = _reference(x)
    assert out.shape == (b, 2, c, h, w)
    assert jnp.allclose(out, ref, atol=1e-5, rtol=1e-5), "mismatch vs reference (main)"

    # Padding path: c*h*w = 105 (not a multiple of 128).
    x2 = jax.random.normal(jax.random.PRNGKey(1), (2, 2, 3, 5, 7), dtype=jnp.float32)
    out2 = jax.block_until_ready(batch_norm_complex(x2))
    assert jnp.allclose(out2, _reference(x2), atol=1e-5, rtol=1e-5), "mismatch (padded)"

    # Partial-last-block path: s_total = 12, tile_s = 8 -> 2 grid steps.
    x3 = jax.random.normal(jax.random.PRNGKey(2), (2, 2, 4, 24, 16), dtype=jnp.float32)
    out3 = jax.block_until_ready(batch_norm_complex(x3))
    assert jnp.allclose(out3, _reference(x3), atol=1e-5, rtol=1e-5), "mismatch (partial block)"

    print("KERNEL_OK")
</pallas_src>

<mosaic_0001>
module attributes {stable_mosaic.version = 11 : i64} {
  func.func @_bn_complex_kernel(%arg0: i32, %arg1: memref<2x2x8x128xf32, #tpu.memory_space<vmem>>, %arg2: memref<2x2x8x128xf32, #tpu.memory_space<vmem>>) attributes {dimension_semantics = [#tpu.dimension_semantics<parallel>], iteration_bounds = array<i64: 1>, scalar_prefetch = 0 : i64, scratch_operands = 0 : i64, tpu.core_type = #tpu.core_type<tc>, window_params = [{transform_indices = @transform_0, window_bounds = array<i64: 2, 2, 8, 128>}, {transform_indices = @transform_1, window_bounds = array<i64: 2, 2, 8, 128>}]} {
    %cst = arith.constant 0.000000e+00 : f32
    %0 = vector.broadcast %cst : f32 to vector<8x128xf32>
    %c0 = arith.constant 0 : index
    %c0_0 = arith.constant 0 : index
    %c0_1 = arith.constant 0 : index
    %c0_2 = arith.constant 0 : index
    %1 = vector.load %arg1[%c0, %c0_0, %c0_1, %c0_2] : memref<2x2x8x128xf32, #tpu.memory_space<vmem>>, vector<1x1x8x128xf32>
    %2 = vector.shape_cast %1 : vector<1x1x8x128xf32> to vector<8x128xf32>
    %c0_3 = arith.constant 0 : index
    %c1 = arith.constant 1 : index
    %c0_4 = arith.constant 0 : index
    %c0_5 = arith.constant 0 : index
    %3 = vector.load %arg1[%c0_3, %c1, %c0_4, %c0_5] : memref<2x2x8x128xf32, #tpu.memory_space<vmem>>, vector<1x1x8x128xf32>
    %4 = vector.shape_cast %3 : vector<1x1x8x128xf32> to vector<8x128xf32>
    %5 = arith.mulf %2, %2 : vector<8x128xf32>
    %6 = arith.addf %0, %5 : vector<8x128xf32>
    %7 = arith.mulf %4, %4 : vector<8x128xf32>
    %8 = arith.addf %6, %7 : vector<8x128xf32>
    %c1_6 = arith.constant 1 : index
    %c0_7 = arith.constant 0 : index
    %c0_8 = arith.constant 0 : index
    %c0_9 = arith.constant 0 : index
    %9 = vector.load %arg1[%c1_6, %c0_7, %c0_8, %c0_9] : memref<2x2x8x128xf32, #tpu.memory_space<vmem>>, vector<1x1x8x128xf32>
    %10 = vector.shape_cast %9 : vector<1x1x8x128xf32> to vector<8x128xf32>
    %c1_10 = arith.constant 1 : index
    %c1_11 = arith.constant 1 : index
    %c0_12 = arith.constant 0 : index
    %c0_13 = arith.constant 0 : index
    %11 = vector.load %arg1[%c1_10, %c1_11, %c0_12, %c0_13] : memref<2x2x8x128xf32, #tpu.memory_space<vmem>>, vector<1x1x8x128xf32>
    %12 = vector.shape_cast %11 : vector<1x1x8x128xf32> to vector<8x128xf32>
    %13 = arith.mulf %10, %10 : vector<8x128xf32>
    %14 = arith.addf %8, %13 : vector<8x128xf32>
    %15 = arith.mulf %12, %12 : vector<8x128xf32>
    %16 = arith.addf %14, %15 : vector<8x128xf32>
    %cst_14 = arith.constant 5.000000e-01 : f32
    %17 = vector.broadcast %cst_14 : f32 to vector<8x128xf32>
    %18 = arith.mulf %16, %17 : vector<8x128xf32>
    %cst_15 = arith.constant 2.000000e-05 : f32
    %19 = vector.broadcast %cst_15 : f32 to vector<8x128xf32>
    %20 = arith.addf %18, %19 : vector<8x128xf32>
    %21 = math.rsqrt %20 : vector<8x128xf32>
    %c0_16 = arith.constant 0 : index
    %c0_17 = arith.constant 0 : index
    %c0_18 = arith.constant 0 : index
    %c0_19 = arith.constant 0 : index
    %22 = vector.load %arg1[%c0_16, %c0_17, %c0_18, %c0_19] : memref<2x2x8x128xf32, #tpu.memory_space<vmem>>, vector<1x1x8x128xf32>
    %23 = vector.shape_cast %22 : vector<1x1x8x128xf32> to vector<8x128xf32>
    %24 = arith.mulf %23, %21 : vector<8x128xf32>
    %c0_20 = arith.constant 0 : index
    %c0_21 = arith.constant 0 : index
    %c0_22 = arith.constant 0 : index
    %c0_23 = arith.constant 0 : index
    %25 = vector.load %arg2[%c0_20, %c0_21, %c0_22, %c0_23] : memref<2x2x8x128xf32, #tpu.memory_space<vmem>>, vector<1x1x8x128xf32>
    %26 = vector.shape_cast %25 : vector<1x1x8x128xf32> to vector<8x128xf32>
    %27 = vector.shape_cast %24 : vector<8x128xf32> to vector<1x1x8x128xf32>
    tpu.vector_store %arg2[%c0_20, %c0_21, %c0_22, %c0_23], %27 {strides = array<i32>} : memref<2x2x8x128xf32, #tpu.memory_space<vmem>>, vector<1x1x8x128xf32>,
    %c0_24 = arith.constant 0 : index
    %c1_25 = arith.constant 1 : index
    %c0_26 = arith.constant 0 : index
    %c0_27 = arith.constant 0 : index
    %28 = vector.load %arg1[%c0_24, %c1_25, %c0_26, %c0_27] : memref<2x2x8x128xf32, #tpu.memory_space<vmem>>, vector<1x1x8x128xf32>
    %29 = vector.shape_cast %28 : vector<1x1x8x128xf32> to vector<8x128xf32>
    %30 = arith.mulf %29, %21 : vector<8x128xf32>
    %c0_28 = arith.constant 0 : index
    %c1_29 = arith.constant 1 : index
    %c0_30 = arith.constant 0 : index
    %c0_31 = arith.constant 0 : index
    %31 = vector.load %arg2[%c0_28, %c1_29, %c0_30, %c0_31] : memref<2x2x8x128xf32, #tpu.memory_space<vmem>>, vector<1x1x8x128xf32>
    %32 = vector.shape_cast %31 : vector<1x1x8x128xf32> to vector<8x128xf32>
    %33 = vector.shape_cast %30 : vector<8x128xf32> to vector<1x1x8x128xf32>
    tpu.vector_store %arg2[%c0_28, %c1_29, %c0_30, %c0_31], %33 {strides = array<i32>} : memref<2x2x8x128xf32, #tpu.memory_space<vmem>>, vector<1x1x8x128xf32>,
    %c1_32 = arith.constant 1 : index
    %c0_33 = arith.constant 0 : index
    %c0_34 = arith.constant 0 : index
    %c0_35 = arith.constant 0 : index
    %34 = vector.load %arg1[%c1_32, %c0_33, %c0_34, %c0_35] : memref<2x2x8x128xf32, #tpu.memory_space<vmem>>, vector<1x1x8x128xf32>
    %35 = vector.shape_cast %34 : vector<1x1x8x128xf32> to vector<8x128xf32>
    %36 = arith.mulf %35, %21 : vector<8x128xf32>
    %c1_36 = arith.constant 1 : index
    %c0_37 = arith.constant 0 : index
    %c0_38 = arith.constant 0 : index
    %c0_39 = arith.constant 0 : index
    %37 = vector.load %arg2[%c1_36, %c0_37, %c0_38, %c0_39] : memref<2x2x8x128xf32, #tpu.memory_space<vmem>>, vector<1x1x8x128xf32>
    %38 = vector.shape_cast %37 : vector<1x1x8x128xf32> to vector<8x128xf32>
    %39 = vector.shape_cast %36 : vector<8x128xf32> to vector<1x1x8x128xf32>
    tpu.vector_store %arg2[%c1_36, %c0_37, %c0_38, %c0_39], %39 {strides = array<i32>} : memref<2x2x8x128xf32, #tpu.memory_space<vmem>>, vector<1x1x8x128xf32>,
    %c1_40 = arith.constant 1 : index
    %c1_41 = arith.constant 1 : index
    %c0_42 = arith.constant 0 : index
    %c0_43 = arith.constant 0 : index
    %40 = vector.load %arg1[%c1_40, %c1_41, %c0_42, %c0_43] : memref<2x2x8x128xf32, #tpu.memory_space<vmem>>, vector<1x1x8x128xf32>
    %41 = vector.shape_cast %40 : vector<1x1x8x128xf32> to vector<8x128xf32>
    %42 = arith.mulf %41, %21 : vector<8x128xf32>
    %c1_44 = arith.constant 1 : index
    %c1_45 = arith.constant 1 : index
    %c0_46 = arith.constant 0 : index
    %c0_47 = arith.constant 0 : index
    %43 = vector.load %arg2[%c1_44, %c1_45, %c0_46, %c0_47] : memref<2x2x8x128xf32, #tpu.memory_space<vmem>>, vector<1x1x8x128xf32>
    %44 = vector.shape_cast %43 : vector<1x1x8x128xf32> to vector<8x128xf32>
    %45 = vector.shape_cast %42 : vector<8x128xf32> to vector<1x1x8x128xf32>
    tpu.vector_store %arg2[%c1_44, %c1_45, %c0_46, %c0_47], %45 {strides = array<i32>} : memref<2x2x8x128xf32, #tpu.memory_space<vmem>>, vector<1x1x8x128xf32>,
    return
  }
  func.func @transform_0(%arg0: i32) -> (i32, i32, i32, i32) {
    %c0_i32 = arith.constant 0 : i32
    %c0_i32_0 = arith.constant 0 : i32
    %c0_i32_1 = arith.constant 0 : i32
    %c0_i32_2 = arith.constant 0 : i32
    return %c0_i32, %c0_i32_0, %arg0, %c0_i32_1 : i32, i32, i32, i32
  }
  func.func @transform_1(%arg0: i32) -> (i32, i32, i32, i32) {
    %c0_i32 = arith.constant 0 : i32
    %c0_i32_0 = arith.constant 0 : i32
    %c0_i32_1 = arith.constant 0 : i32
    %c0_i32_2 = arith.constant 0 : i32
    return %c0_i32, %c0_i32_0, %arg0, %c0_i32_1 : i32, i32, i32, i32
  }
}

</mosaic_0001>

<llo_original>
// kernel: tpu_custom_call.1
$region0: #{tpu_custom_call.1}
  #allocation0 [shape = 'u32[]', space=smem, size = 0x4, offset = 0x4, fixed_abs, tag = 'smem constant byte address 0x4 - core index']
  #allocation1 [shape = 'u32[144,128]{1,0:T(1,128)}', space=vmem, size = 0x12000, scoped, tag = 'internal scratch']
  %s0 = inlined_call_operand.hbm [shape: f32[2,2,8,128], index: 0, kind: input, shape index: {}]
  %s1 = inlined_call_operand.hbm [shape: f32[2,2,8,128], index: 1, kind: output, shape index: {}]
  %s2 = sld [smem:[#allocation0]]
  $region18: #{tpu_custom_call.1} parent=0
    _
  %s4 = ssub.s32 1, %s2
  %s5 = scalar_select 0, %s4, %s2
  $region1: #{tpu_custom_call.1} parent=0
    #allocation2 [shape = 'u8[16384]{0}', space=vmem, size = 0x4000, scoped, tag = 'input window, operand 0, single buffered']
    #allocation3 [shape = 's32[1]{0}', space=sflag, size = 0x4, scoped, tag = 'scoped memory for tpu_custom_call.1']
    #allocation4 [shape = 's32[1]{0}', space=sflag, size = 0x4, scoped, tag = 'scoped memory for tpu_custom_call.1']
    #allocation5 [shape = 'u8[16384]{0}', space=vmem, size = 0x4000, scoped, tag = 'output window, operand 0, single buffered']
    %6 = vsyncpa [#allocation3], 0
    %7 = vsyncpa [#allocation4], 0
    // Predicated region
    $region2: #{tpu_custom_call.1} parent=1 // pred_check
      _
    $region3: #{tpu_custom_call.1} parent=1 // pred_check_branch
      %9 = sbr.rel (0) target = $region5
    $region4: #{tpu_custom_call.1} parent=1 // pred_region
      %s11 = ssub.s32 512, 512
      %12 = vsyncadd [#allocation3], %s11
      %s13 = sshll.u32 [#allocation2], 4
      %s14 = int_to_ptr.vmem [resolvable:$true] %s13
      %19 = dma.hbm_to_vmem [thread:$0]  %s0, 512, %s14, [#allocation3], 128, 128, 8
    $region5: #{tpu_custom_call.1} parent=1 // pred_fallthru
      _
    // Predicated region
    $region6: #{tpu_custom_call.1} parent=1 // pred_check
      _
    $region7: #{tpu_custom_call.1} parent=1 // pred_check_branch
      %21 = sbr.rel (0) target = $region9
    $region8: #{tpu_custom_call.1} parent=1 // pred_region
      %22 = dma.done [#allocation3], 512
    $region9: #{tpu_custom_call.1} parent=1 // pred_fallthru
      _
    %v23 = vld [vmem:[#allocation2] sm:$0xff]
    %s24 = scalar_lea.vmem [#allocation2], 8
    %v25 = vld [vmem:[%s24] sm:$0xff]
    %v26 = vmul.f32 %v23, %v23
    %v27 = vadd.f32 %v26, 0.0
    %v28 = vmul.f32 %v25, %v25
    %v29 = vadd.f32 %v27, %v28
    %s30 = scalar_lea.vmem [#allocation2], 16
    %v31 = vld [vmem:[%s30] sm:$0xff]
    %s32 = scalar_lea.vmem [#allocation2], 24
    %v33 = vld [vmem:[%s32] sm:$0xff]
    %v34 = vmul.f32 %v31, %v31
    %v35 = vadd.f32 %v29, %v34
    %v36 = vmul.f32 %v33, %v33
    %v37 = vadd.f32 %v35, %v36
    %v38 = vmul.f32 %v37, 0.5
    %v39 = vadd.f32 %v38, 2e-05
    %v40 = vrsqrt.pop %v39
    %v41 = vmul.f32 %v23, %v40
    %42 = vst [vmem:[#allocation5] sm:$0xff] %v41
    %v43 = vld [vmem:[%s24] sm:$0xff]
    %v44 = vmul.f32 %v43, %v40
    %s45 = scalar_lea.vmem [#allocation5], 8
    %46 = vst [vmem:[%s45] sm:$0xff] %v44
    %v47 = vld [vmem:[%s30] sm:$0xff]
    %v48 = vmul.f32 %v47, %v40
    %s49 = scalar_lea.vmem [#allocation5], 16
    %50 = vst [vmem:[%s49] sm:$0xff] %v48
    %v51 = vld [vmem:[%s32] sm:$0xff]
    %v52 = vmul.f32 %v51, %v40
    %s53 = scalar_lea.vmem [#allocation5], 24
    %54 = vst [vmem:[%s53] sm:$0xff] %v52
    // Predicated region
    $region10: #{tpu_custom_call.1} parent=1 // pred_check
      _
    $region11: #{tpu_custom_call.1} parent=1 // pred_check_branch
      %56 = sbr.rel (0) target = $region13
    $region12: #{tpu_custom_call.1} parent=1 // pred_region
      %s58 = ssub.s32 512, 512
      %59 = vsyncadd [#allocation4], %s58
      %s60 = sshll.u32 [#allocation5], 4
      %s61 = int_to_ptr.vmem [resolvable:$true] %s60
      %66 = dma.vmem_to_hbm [thread:$0]  %s61, 512, %s1, [#allocation4], 128, 128, 8
    $region13: #{tpu_custom_call.1} parent=1 // pred_fallthru
      _
    // Predicated region
    $region14: #{tpu_custom_call.1} parent=1 // pred_check
      _
    $region15: #{tpu_custom_call.1} parent=1 // pred_check_branch
      %68 = sbr.rel (0) target = $region17
    $region16: #{tpu_custom_call.1} parent=1 // pred_region
      %69 = dma.done [#allocation4], 512
    $region17: #{tpu_custom_call.1} parent=1 // pred_fallthru
      _
    %70 = vsyncpa [#allocation3], 1
    %71 = vsyncpa [#allocation4], 1

</llo_original>
